<compile_context>
chip_gen: v5e
topology: v5e:2x2
jax: 0.10.0
libtpu: 0.0.40
codegen_flags: <defaults>
</compile_context>

<pallas_src>
import functools

import jax
import jax.numpy as jnp
from jax.experimental import pallas as pl
from jax.experimental.pallas import tpu as pltpu

LN_EPS = 1e-5


# ----------------------------- kernel bodies --------------------------------

def _gate_add_norm_body(x_ref, w2t_ref, b2_ref, gamma_ref, beta_ref, o_ref,
                        res_ref, *, inv_d):
    # x_ref:      (TM, D) row tile of the flattened (rows, D) input
    # w2t_ref:    (D, D)  GLU fc2 weight, PRE-TRANSPOSED to (in, out), x.dtype
    # b2_ref:     (1, D)  GLU fc2 bias (f32)
    # gamma/beta: (1, D)  LayerNorm affine params (f32)
    # res_ref:    (TM, D) residual tile or None
    # inv_d:      1 / D   (LayerNorm statistics)

    # fc2(x) = x @ W2t + b2 — MXU in the input dtype, f32 accumulation.
    y = jnp.dot(x_ref[...], w2t_ref[...], preferred_element_type=jnp.float32)
    y = y + b2_ref[...].astype(jnp.float32)

    # GLU as written in the reference: fc2(x) * fc2(x)  (no sigmoid, fc1 unused)
    g = y * y

    if res_ref is not None:
        g = g + res_ref[...].astype(jnp.float32)

    # Two-pass LayerNorm over the feature axis (numerically stable).
    mean = jnp.sum(g, axis=-1, keepdims=True) * jnp.float32(inv_d)
    centered = g - mean
    var = jnp.sum(centered * centered, axis=-1, keepdims=True) * jnp.float32(inv_d)
    normed = centered * jax.lax.rsqrt(var + LN_EPS)
    out = normed * gamma_ref[...].astype(jnp.float32) \
          + beta_ref[...].astype(jnp.float32)

    o_ref[...] = out.astype(o_ref.dtype)


def _kernel_with_res(x_ref, w2t_ref, b2_ref, res_ref, gamma_ref, beta_ref,
                     o_ref, *, inv_d):
    _gate_add_norm_body(x_ref, w2t_ref, b2_ref, gamma_ref, beta_ref, o_ref,
                        res_ref, inv_d=inv_d)


def _kernel_no_res(x_ref, w2t_ref, b2_ref, gamma_ref, beta_ref, o_ref, *,
                   inv_d):
    _gate_add_norm_body(x_ref, w2t_ref, b2_ref, gamma_ref, beta_ref, o_ref,
                        None, inv_d=inv_d)


# ------------------------------- wrapper -------------------------------------

def _round_up(n, m):
    return ((n + m - 1) // m) * m


def prepare_params(params, dtype=jnp.float32):
    """One-time parameter prep (transpose + cast).  Cache the result and reuse
    it across calls so the D x D transpose isn't redone every step."""
    return {
        "w2t": jnp.asarray(params["w2"]).T.astype(dtype),          # (in, out)
        "b2": jnp.asarray(params["b2"], jnp.float32).reshape(1, -1),
        "gamma": jnp.asarray(params["gamma"], jnp.float32).reshape(1, -1),
        "beta": jnp.asarray(params["beta"], jnp.float32).reshape(1, -1),
    }


def gate_add_norm(x, params, residual=None, *, row_tile=512):
    """x: (B, T, D); residual: (B, T, D) or None. Returns (B, T, D)."""
    B, T, D = x.shape
    rows = B * T
    dtype = x.dtype

    # Accept either raw params ({'w2','b2','gamma','beta'}) or prepared ones.
    if "w2t" not in params:
        params = prepare_params(params, dtype)
    w2t, b2 = params["w2t"], params["b2"]
    gamma, beta = params["gamma"], params["beta"]

    # Row tile: large by default, shrunk for small inputs; keep >= 2 grid steps
    # when possible so both v7x TensorCores get work under "parallel".
    rt = min(row_tile, _round_up(rows, 8))
    if rows > 8:
        rt = min(rt, _round_up(pl.cdiv(rows, 2), 8))
    rt = max(rt, 8)
    grid = (pl.cdiv(rows, rt),)

    # No HBM padding: feature blocks span the full D (allowed for any D), the
    # ragged last row block is handled by Pallas (OOB writes dropped; garbage
    # OOB rows never influence valid rows since all math is per-row).
    x2 = x.reshape(rows, D)
    row_spec = pl.BlockSpec((rt, D), lambda i: (i, 0))
    bcast_spec = pl.BlockSpec((1, D), lambda i: (0, 0))
    weight_spec = pl.BlockSpec((D, D), lambda i: (0, 0))

    # VMEM budget: double-buffered row-streamed tiles + resident weight + params.
    itemsize = jnp.dtype(dtype).itemsize
    n_row_streams = 3 if residual is not None else 2          # x (+res) + out
    est = (2 * n_row_streams * rt * D * itemsize
           + 2 * D * D * jnp.dtype(w2t.dtype).itemsize
           + 8 * D * 4 + (1 << 20))
    try:
        phys_vmem = int(pltpu.get_tpu_info().vmem_capacity_bytes)
    except Exception:
        phys_vmem = 64 << 20                                   # v7x per-TC floor
    vmem_limit = int(min(int(phys_vmem * 0.75), max(2 * est, 16 << 20)))

    compiler_params = pltpu.CompilerParams(
        dimension_semantics=("parallel",),      # shards rows across v7x TCs
        vmem_limit_bytes=vmem_limit)

    cost = pl.CostEstimate(
        flops=2 * rows * D * D,
        transcendentals=0,
        bytes_accessed=(n_row_streams * rows * D * itemsize
                        + D * D * jnp.dtype(w2t.dtype).itemsize
                        + 3 * D * 4))

    if residual is not None:
        r2 = residual.reshape(rows, D)
        kernel = functools.partial(_kernel_with_res, inv_d=1.0 / D)
        in_specs = [row_spec, weight_spec, bcast_spec, row_spec, bcast_spec,
                    bcast_spec]
        args = (x2, w2t, b2, r2, gamma, beta)
    else:
        kernel = functools.partial(_kernel_no_res, inv_d=1.0 / D)
        in_specs = [row_spec, weight_spec, bcast_spec, bcast_spec, bcast_spec]
        args = (x2, w2t, b2, gamma, beta)

    out2 = pl.pallas_call(
        kernel,
        out_shape=jax.ShapeDtypeStruct((rows, D), dtype),
        grid_spec=pltpu.PrefetchScalarGridSpec(
            num_scalar_prefetch=0,
            grid=grid,
            in_specs=in_specs,
            out_specs=row_spec,
        ),
        compiler_params=compiler_params,
        cost_estimate=cost,
    )(*args)

    return out2.reshape(B, T, D)


# ------------------------------ test harness ---------------------------------

def init_params(key, input_dim):
    """Deterministic init mimicking PyTorch nn.Linear default (uniform +-1/sqrt(D))."""
    k_w, k_b = jax.random.split(key)
    bound = 1.0 / (input_dim ** 0.5)
    w2 = jax.random.uniform(k_w, (input_dim, input_dim), jnp.float32,
                            -bound, bound)
    b2 = jax.random.uniform(k_b, (input_dim,), jnp.float32, -bound, bound)
    gamma = jnp.ones((input_dim,), jnp.float32)   # LayerNorm weight
    beta = jnp.zeros((input_dim,), jnp.float32)   # LayerNorm bias
    return {"w2": w2, "b2": b2, "gamma": gamma, "beta": beta}


def _reference(x, params, residual):
    """Plain-JAX reference of the same (bug-faithful) forward pass."""
    B, T, D = x.shape
    x2 = x.reshape(B * T, D)
    y = x2 @ params["w2"].T + params["b2"]
    g = y * y
    if residual is not None:
        g = g + residual.reshape(B * T, D)
    mean = jnp.mean(g, axis=-1, keepdims=True)
    var = jnp.mean((g - mean) ** 2, axis=-1, keepdims=True)
    out = (g - mean) / jnp.sqrt(var + LN_EPS)
    out = out * params["gamma"] + params["beta"]
    return out.reshape(B, T, D)


if __name__ == "__main__":
    B, T, D = 2, 8, 32
    key = jax.random.PRNGKey(0)
    k_x, k_r, k_p = jax.random.split(key, 3)

    x = jax.random.normal(k_x, (B, T, D), jnp.float32)
    residual = jax.random.normal(k_r, (B, T, D), jnp.float32)
    params = init_params(k_p, D)

    # one-time parameter prep (transpose + cast), reused across calls
    prepped = prepare_params(params, x.dtype)

    # with residual
    out = jax.block_until_ready(gate_add_norm(x, prepped, residual))
    ref = _reference(x, params, residual)
    assert out.shape == (B, T, D)
    assert jnp.allclose(out, ref, atol=1e-4, rtol=1e-4), "mismatch (residual)"

    # no-residual fast path (no zero tensor streamed)
    out_nr = jax.block_until_ready(gate_add_norm(x, prepped, None))
    ref_nr = _reference(x, params, None)
    assert jnp.allclose(out_nr, ref_nr, atol=1e-4, rtol=1e-4), "mismatch (no residual)"

    print("KERNEL_OK")
</pallas_src>

<mosaic_0001>
module attributes {stable_mosaic.version = 11 : i64} {
  func.func @_kernel_with_res(%arg0: i32, %arg1: memref<8x32xf32, #tpu.memory_space<vmem>>, %arg2: memref<32x32xf32, #tpu.memory_space<vmem>>, %arg3: memref<1x32xf32, #tpu.memory_space<vmem>>, %arg4: memref<8x32xf32, #tpu.memory_space<vmem>>, %arg5: memref<1x32xf32, #tpu.memory_space<vmem>>, %arg6: memref<1x32xf32, #tpu.memory_space<vmem>>, %arg7: memref<8x32xf32, #tpu.memory_space<vmem>>) attributes {dimension_semantics = [#tpu.dimension_semantics<parallel>], iteration_bounds = array<i64: 2>, scalar_prefetch = 0 : i64, scratch_operands = 0 : i64, tpu.core_type = #tpu.core_type<tc>, window_params = [{transform_indices = @transform_0, window_bounds = array<i64: 8, 32>}, {pipeline_mode = #tpu.pipeline_mode<synchronous>, transform_indices = @transform_1, window_bounds = array<i64: 32, 32>}, {pipeline_mode = #tpu.pipeline_mode<synchronous>, transform_indices = @transform_2, window_bounds = array<i64: 1, 32>}, {transform_indices = @transform_3, window_bounds = array<i64: 8, 32>}, {pipeline_mode = #tpu.pipeline_mode<synchronous>, transform_indices = @transform_4, window_bounds = array<i64: 1, 32>}, {pipeline_mode = #tpu.pipeline_mode<synchronous>, transform_indices = @transform_5, window_bounds = array<i64: 1, 32>}, {transform_indices = @transform_6, window_bounds = array<i64: 8, 32>}]} {
    %c0 = arith.constant 0 : index
    %c0_0 = arith.constant 0 : index
    %0 = vector.load %arg1[%c0, %c0_0] : memref<8x32xf32, #tpu.memory_space<vmem>>, vector<8x32xf32>
    %c0_1 = arith.constant 0 : index
    %c0_2 = arith.constant 0 : index
    %1 = vector.load %arg2[%c0_1, %c0_2] : memref<32x32xf32, #tpu.memory_space<vmem>>, vector<32x32xf32>
    %cst = arith.constant dense<0.000000e+00> : vector<8x32xf32>
    %2 = tpu.matmul %0, %1, %cst {dimension_numbers = #tpu.dot_dimension_numbers<[1], [0], [0], [1], [0, 0, 1, 1], [], []>} : vector<8x32xf32>, vector<32x32xf32>, vector<8x32xf32> -> vector<8x32xf32>
    %c0_3 = arith.constant 0 : index
    %c0_4 = arith.constant 0 : index
    %3 = vector.load %arg3[%c0_3, %c0_4] : memref<1x32xf32, #tpu.memory_space<vmem>>, vector<1x32xf32>
    %4 = vector.broadcast %3 : vector<1x32xf32> to vector<8x32xf32>
    %5 = arith.addf %2, %4 : vector<8x32xf32>
    %6 = arith.mulf %5, %5 : vector<8x32xf32>
    %c0_5 = arith.constant 0 : index
    %c0_6 = arith.constant 0 : index
    %7 = vector.load %arg4[%c0_5, %c0_6] : memref<8x32xf32, #tpu.memory_space<vmem>>, vector<8x32xf32>
    %8 = arith.addf %6, %7 : vector<8x32xf32>
    %cst_7 = arith.constant dense<0.000000e+00> : vector<8xf32>
    %9 = vector.multi_reduction <add>, %8, %cst_7 [1] : vector<8x32xf32> to vector<8xf32>
    %10 = vector.shape_cast %9 : vector<8xf32> to vector<8x1xf32>
    %cst_8 = arith.constant 3.125000e-02 : f32
    %11 = vector.broadcast %cst_8 : f32 to vector<8x1xf32>
    %12 = arith.mulf %10, %11 : vector<8x1xf32>
    %13 = vector.broadcast %12 : vector<8x1xf32> to vector<8x32xf32>
    %14 = arith.subf %8, %13 : vector<8x32xf32>
    %15 = arith.mulf %14, %14 : vector<8x32xf32>
    %cst_9 = arith.constant dense<0.000000e+00> : vector<8xf32>
    %16 = vector.multi_reduction <add>, %15, %cst_9 [1] : vector<8x32xf32> to vector<8xf32>
    %17 = vector.shape_cast %16 : vector<8xf32> to vector<8x1xf32>
    %cst_10 = arith.constant 3.125000e-02 : f32
    %18 = vector.broadcast %cst_10 : f32 to vector<8x1xf32>
    %19 = arith.mulf %17, %18 : vector<8x1xf32>
    %cst_11 = arith.constant 9.99999974E-6 : f32
    %20 = vector.broadcast %cst_11 : f32 to vector<8x1xf32>
    %21 = arith.addf %19, %20 : vector<8x1xf32>
    %22 = math.rsqrt %21 : vector<8x1xf32>
    %23 = vector.broadcast %22 : vector<8x1xf32> to vector<8x32xf32>
    %24 = arith.mulf %14, %23 : vector<8x32xf32>
    %c0_12 = arith.constant 0 : index
    %c0_13 = arith.constant 0 : index
    %25 = vector.load %arg5[%c0_12, %c0_13] : memref<1x32xf32, #tpu.memory_space<vmem>>, vector<1x32xf32>
    %26 = vector.broadcast %25 : vector<1x32xf32> to vector<8x32xf32>
    %27 = arith.mulf %24, %26 : vector<8x32xf32>
    %c0_14 = arith.constant 0 : index
    %c0_15 = arith.constant 0 : index
    %28 = vector.load %arg6[%c0_14, %c0_15] : memref<1x32xf32, #tpu.memory_space<vmem>>, vector<1x32xf32>
    %29 = vector.broadcast %28 : vector<1x32xf32> to vector<8x32xf32>
    %30 = arith.addf %27, %29 : vector<8x32xf32>
    %c0_16 = arith.constant 0 : index
    %c0_17 = arith.constant 0 : index
    %31 = vector.load %arg7[%c0_16, %c0_17] : memref<8x32xf32, #tpu.memory_space<vmem>>, vector<8x32xf32>
    tpu.vector_store %arg7[%c0_16, %c0_17], %30 {strides = array<i32>} : memref<8x32xf32, #tpu.memory_space<vmem>>, vector<8x32xf32>,
    return
  }
  func.func @transform_0(%arg0: i32) -> (i32, i32) {
    %c0_i32 = arith.constant 0 : i32
    %c0_i32_0 = arith.constant 0 : i32
    return %arg0, %c0_i32 : i32, i32
  }
  func.func @transform_1(%arg0: i32) -> (i32, i32) {
    %c0_i32 = arith.constant 0 : i32
    %c0_i32_0 = arith.constant 0 : i32
    %c0_i32_1 = arith.constant 0 : i32
    return %c0_i32, %c0_i32_0 : i32, i32
  }
  func.func @transform_2(%arg0: i32) -> (i32, i32) {
    %c0_i32 = arith.constant 0 : i32
    %c0_i32_0 = arith.constant 0 : i32
    %c0_i32_1 = arith.constant 0 : i32
    return %c0_i32, %c0_i32_0 : i32, i32
  }
  func.func @transform_3(%arg0: i32) -> (i32, i32) {
    %c0_i32 = arith.constant 0 : i32
    %c0_i32_0 = arith.constant 0 : i32
    return %arg0, %c0_i32 : i32, i32
  }
  func.func @transform_4(%arg0: i32) -> (i32, i32) {
    %c0_i32 = arith.constant 0 : i32
    %c0_i32_0 = arith.constant 0 : i32
    %c0_i32_1 = arith.constant 0 : i32
    return %c0_i32, %c0_i32_0 : i32, i32
  }
  func.func @transform_5(%arg0: i32) -> (i32, i32) {
    %c0_i32 = arith.constant 0 : i32
    %c0_i32_0 = arith.constant 0 : i32
    %c0_i32_1 = arith.constant 0 : i32
    return %c0_i32, %c0_i32_0 : i32, i32
  }
  func.func @transform_6(%arg0: i32) -> (i32, i32) {
    %c0_i32 = arith.constant 0 : i32
    %c0_i32_0 = arith.constant 0 : i32
    return %arg0, %c0_i32 : i32, i32
  }
}

</mosaic_0001>

<llo_original>
// kernel: tpu_custom_call.1
$region0: #{tpu_custom_call.1}
  #allocation0 [shape = 'u32[]', space=smem, size = 0x4, offset = 0x4, fixed_abs, tag = 'smem constant byte address 0x4 - core index']
  #allocation1 [shape = 'u32[72,128]{1,0:T(1,128)}', space=vmem, size = 0x9000, scoped, tag = 'internal scratch']
  %s0 = inlined_call_operand.hbm [shape: f32[16,32], index: 0, kind: input, shape index: {}]
  %s1 = inlined_call_operand.hbm [shape: f32[32,32], index: 1, kind: input, shape index: {}]
  %s2 = inlined_call_operand.vmem [shape: f32[1,32], index: 2, kind: input, shape index: {}]
  %s3 = inlined_call_operand.hbm [shape: f32[16,32], index: 3, kind: input, shape index: {}]
  %s4 = inlined_call_operand.vmem [shape: f32[1,32], index: 4, kind: input, shape index: {}]
  %s5 = inlined_call_operand.vmem [shape: f32[1,32], index: 5, kind: input, shape index: {}]
  %s6 = inlined_call_operand.hbm [shape: f32[16,32], index: 6, kind: output, shape index: {}]
  %s7 = sld [smem:[#allocation0]]
  $region69: #{tpu_custom_call.1} parent=0
    _
  %s9 = ssub.s32 1, %s7
  %s10 = scalar_select 0, %s9, %s7
  $region1: #{tpu_custom_call.1} parent=0
    #allocation2 [shape = 'u8[8192]{0}', space=vmem, size = 0x2000, scoped, tag = 'input window, operand 0']
    #allocation3 [shape = 's32[2]{0}', space=sflag, size = 0x8, scoped, tag = 'scoped memory for tpu_custom_call.1']
    #allocation4 [shape = 's32[2]{0}', space=sflag, size = 0x8, scoped, tag = 'scoped memory for tpu_custom_call.1']
    #allocation5 [shape = 'u8[16384]{0}', space=vmem, size = 0x4000, scoped, tag = 'input window, operand 1, single buffered']
    #allocation6 [shape = 's32[1]{0}', space=sflag, size = 0x4, scoped, tag = 'scoped memory for tpu_custom_call.1']
    #allocation7 [shape = 'u8[8192]{0}', space=vmem, size = 0x2000, scoped, tag = 'input window, operand 3']
    #allocation8 [shape = 'u8[8192]{0}', space=vmem, size = 0x2000, scoped, tag = 'output window, operand 0']
    %11 = vsyncpa [#allocation3], 0
    %s12 = scalar_lea.sflag [#allocation3], 1
    %13 = vsyncpa %s12, 0
    %14 = vsyncpa [#allocation6], 0
    %15 = vsyncpa [#allocation4], 0
    %s16 = scalar_lea.sflag [#allocation4], 1
    %17 = vsyncpa %s16, 0
    loop: start=0, step=1, limit=4
    $region2: #{tpu_custom_call.1} parent=1 // loop_pre_header
      _
    $region3: #{tpu_custom_call.1} parent=1 // loop_header
      %s19 = sphi 0, %s23
      %p20 = scmp.ge.s32.totalorder %s19, 4
      %s29 = sphi 0, %s31
      %s32 = sphi 0, %s29
      %s33 = sphi 0, %s32
      %s49 = sphi 0, %s33
      %s53 = sphi 0, %s53
      %s55 = sphi 0, %s53
      %s56 = sphi 0, %s55
      %s70 = sphi 0, %s56
      %s74 = sphi 0, %s74
      %s76 = sphi 0, %s74
      %s77 = sphi 0, %s76
      %s91 = sphi 0, %s77
      %s97 = sphi 0, %s99
      %s100 = sphi 0, %s97
      %s101 = sphi 0, %s100
      %s117 = sphi 0, %s101
      %s121 = sphi 0, %s121
      %s123 = sphi 0, %s121
      %s124 = sphi 0, %s123
      %s138 = sphi 0, %s124
      %s142 = sphi 0, %s142
      %s144 = sphi 0, %s142
      %s145 = sphi 0, %s144
      %s159 = sphi 0, %s145
      %s165 = sphi 0, %s167
      %s168 = sphi 0, %s165
      %s169 = sphi 0, %s168
      %s185 = sphi 0, %s169
    $region4: #{tpu_custom_call.1} parent=1 // loop_header_branch
      %22 = sbr.rel (%p20) target = $region8
    $region5: #{tpu_custom_call.1} parent=1 // loop_body
      %s24 = ssub.s32 %s19, 1
      %s25 = ssub.s32 %s19, 2
      %s26 = sadd.s32 %s19, 1
      %s27 = ssub.s32 %s19, %s26
      %p28 = scmp.eq.s32.totalorder %s27, 0
      %s30 = sadd.s32 %s29, 1
      %s31 = scalar_select %p28, %s29, %s30
      %p34 = pneg %p28
      %p35 = scmp.eq.s32.totalorder %s19, 1
      %p36 = por %p34, %p35
      %p37 = scmp.ne.s32.totalorder %s29, %s32
      %p38 = scmp.eq.s32.totalorder %s19, 0
      %p39 = por %p37, %p38
      %p40 = scmp.ne.s32.totalorder %s29, %s32
      %p41 = scmp.eq.s32.totalorder %s24, 1
      %p42 = por %p40, %p41
      %p43 = scmp.ne.s32.totalorder %s32, %s33
      %p44 = scmp.eq.s32.totalorder %s24, 0
      %p45 = por %p43, %p44
      %p46 = scmp.ne.s32.totalorder %s32, %s33
      %p47 = scmp.eq.s32.totalorder %s25, 1
      %p48 = por %p46, %p47
      %p50 = scmp.ne.s32.totalorder %s33, %s49
      %p51 = scmp.eq.s32.totalorder %s25, 0
      %p52 = por %p50, %p51
      %s54 = sadd.s32 %s53, 1
      %p57 = scmp.eq.s32.totalorder %s19, 1
      %p58 = scmp.ne.s32.totalorder %s53, %s55
      %p59 = scmp.eq.s32.totalorder %s19, 0
      %p60 = por %p58, %p59
      %p61 = scmp.ne.s32.totalorder %s53, %s55
      %p62 = scmp.eq.s32.totalorder %s24, 1
      %p63 = por %p61, %p62
      %p64 = scmp.ne.s32.totalorder %s55, %s56
      %p65 = scmp.eq.s32.totalorder %s24, 0
      %p66 = por %p64, %p65
      %p67 = scmp.ne.s32.totalorder %s55, %s56
      %p68 = scmp.eq.s32.totalorder %s25, 1
      %p69 = por %p67, %p68
      %p71 = scmp.ne.s32.totalorder %s56, %s70
      %p72 = scmp.eq.s32.totalorder %s25, 0
      %p73 = por %p71, %p72
      %s75 = sadd.s32 %s74, 1
      %p78 = scmp.eq.s32.totalorder %s19, 1
      %p79 = scmp.ne.s32.totalorder %s74, %s76
      %p80 = scmp.eq.s32.totalorder %s19, 0
      %p81 = por %p79, %p80
      %p82 = scmp.ne.s32.totalorder %s74, %s76
      %p83 = scmp.eq.s32.totalorder %s24, 1
      %p84 = por %p82, %p83
      %p85 = scmp.ne.s32.totalorder %s76, %s77
      %p86 = scmp.eq.s32.totalorder %s24, 0
      %p87 = por %p85, %p86
      %p88 = scmp.ne.s32.totalorder %s76, %s77
      %p89 = scmp.eq.s32.totalorder %s25, 1
      %p90 = por %p88, %p89
      %p92 = scmp.ne.s32.totalorder %s77, %s91
      %p93 = scmp.eq.s32.totalorder %s25, 0
      %p94 = por %p92, %p93
      %s95 = ssub.s32 %s19, %s26
      %p96 = scmp.eq.s32.totalorder %s95, 0
      %s98 = sadd.s32 %s97, 1
      %s99 = scalar_select %p96, %s97, %s98
      %p102 = pneg %p96
      %p103 = scmp.eq.s32.totalorder %s19, 1
      %p104 = por %p102, %p103
      %p105 = scmp.ne.s32.totalorder %s97, %s100
      %p106 = scmp.eq.s32.totalorder %s19, 0
      %p107 = por %p105, %p106
      %p108 = scmp.ne.s32.totalorder %s97, %s100
      %p109 = scmp.eq.s32.totalorder %s24, 1
      %p110 = por %p108, %p109
      %p111 = scmp.ne.s32.totalorder %s100, %s101
      %p112 = scmp.eq.s32.totalorder %s24, 0
      %p113 = por %p111, %p112
      %p114 = scmp.ne.s32.totalorder %s100, %s101
      %p115 = scmp.eq.s32.totalorder %s25, 1
      %p116 = por %p114, %p115
      %p118 = scmp.ne.s32.totalorder %s101, %s117
      %p119 = scmp.eq.s32.totalorder %s25, 0
      %p120 = por %p118, %p119
      %s122 = sadd.s32 %s121, 1
      %p125 = scmp.eq.s32.totalorder %s19, 1
      %p126 = scmp.ne.s32.totalorder %s121, %s123
      %p127 = scmp.eq.s32.totalorder %s19, 0
      %p128 = por %p126, %p127
      %p129 = scmp.ne.s32.totalorder %s121, %s123
      %p130 = scmp.eq.s32.totalorder %s24, 1
      %p131 = por %p129, %p130
      %p132 = scmp.ne.s32.totalorder %s123, %s124
      %p133 = scmp.eq.s32.totalorder %s24, 0
      %p134 = por %p132, %p133
      %p135 = scmp.ne.s32.totalorder %s123, %s124
      %p136 = scmp.eq.s32.totalorder %s25, 1
      %p137 = por %p135, %p136
      %p139 = scmp.ne.s32.totalorder %s124, %s138
      %p140 = scmp.eq.s32.totalorder %s25, 0
      %p141 = por %p139, %p140
      %s143 = sadd.s32 %s142, 1
      %p146 = scmp.eq.s32.totalorder %s19, 1
      %p147 = scmp.ne.s32.totalorder %s142, %s144
      %p148 = scmp.eq.s32.totalorder %s19, 0
      %p149 = por %p147, %p148
      %p150 = scmp.ne.s32.totalorder %s142, %s144
      %p151 = scmp.eq.s32.totalorder %s24, 1
      %p152 = por %p150, %p151
      %p153 = scmp.ne.s32.totalorder %s144, %s145
      %p154 = scmp.eq.s32.totalorder %s24, 0
      %p155 = por %p153, %p154
      %p156 = scmp.ne.s32.totalorder %s144, %s145
      %p157 = scmp.eq.s32.totalorder %s25, 1
      %p158 = por %p156, %p157
      %p160 = scmp.ne.s32.totalorder %s145, %s159
      %p161 = scmp.eq.s32.totalorder %s25, 0
      %p162 = por %p160, %p161
      %s163 = ssub.s32 %s19, %s26
      %p164 = scmp.eq.s32.totalorder %s163, 0
      %s166 = sadd.s32 %s165, 1
      %s167 = scalar_select %p164, %s165, %s166
      %p170 = pneg %p164
      %p171 = scmp.eq.s32.totalorder %s19, 1
      %p172 = por %p170, %p171
      %p173 = scmp.ne.s32.totalorder %s165, %s168
      %p174 = scmp.eq.s32.totalorder %s19, 0
      %p175 = por %p173, %p174
      %p176 = scmp.ne.s32.totalorder %s165, %s168
      %p177 = scmp.eq.s32.totalorder %s24, 1
      %p178 = por %p176, %p177
      %p179 = scmp.ne.s32.totalorder %s168, %s169
      %p180 = scmp.eq.s32.totalorder %s24, 0
      %p181 = por %p179, %p180
      %p182 = scmp.ne.s32.totalorder %s168, %s169
      %p183 = scmp.eq.s32.totalorder %s25, 1
      %p184 = por %p182, %p183
      %p186 = scmp.ne.s32.totalorder %s169, %s185
      %p187 = scmp.eq.s32.totalorder %s25, 0
      %p188 = por %p186, %p187
      %p189 = scmp.le.s32.totalorder 1, %s19
      %p190 = scmp.lt.s32.totalorder %s19, 3
      %p191 = pnand %p189, %p190
      %p192 = pneg %p191
      // Predicated region
      $region9: #{tpu_custom_call.1} parent=5 // pred_check
        _
      $region10: #{tpu_custom_call.1} parent=5 // pred_check_branch
        %194 = sbr.rel (%p191) target = $region12
      $region11: #{tpu_custom_call.1} parent=5 // pred_region
        %s195 = ssub.s32 %s19, 1
        // Predicated region
        $region13: #{tpu_custom_call.1} parent=11 // pred_check
          %p196 = pneg %p66
        $region14: #{tpu_custom_call.1} parent=11 // pred_check_branch
          %198 = sbr.rel (%p196) target = $region16
        $region15: #{tpu_custom_call.1} parent=11 // pred_region
          %200 = vsyncadd [#allocation6], 0
          %s201 = sshll.u32 %s1, 4
          %s202 = int_to_ptr.hbm [resolvable:$true] %s201
          %s203 = sshll.u32 [#allocation5], 4
          %s204 = int_to_ptr.vmem [resolvable:$true] %s203
          %209 = dma.hbm_to_vmem [thread:$0]  %s202, 512, %s204, [#allocation6], 128, 128, 8
        $region16: #{tpu_custom_call.1} parent=11 // pred_fallthru
          _
        // Predicated region
        $region17: #{tpu_custom_call.1} parent=11 // pred_check
          %p210 = pneg %p87
        $region18: #{tpu_custom_call.1} parent=11 // pred_check_branch
          %212 = sbr.rel (%p210) target = $region20
        $region19: #{tpu_custom_call.1} parent=11 // pred_region
          _
        $region20: #{tpu_custom_call.1} parent=11 // pred_fallthru
          _
        // Predicated region
        $region21: #{tpu_custom_call.1} parent=11 // pred_check
          %p213 = pneg %p134
        $region22: #{tpu_custom_call.1} parent=11 // pred_check_branch
          %215 = sbr.rel (%p213) target = $region24
        $region23: #{tpu_custom_call.1} parent=11 // pred_region
          _
        $region24: #{tpu_custom_call.1} parent=11 // pred_fallthru
          _
        // Predicated region
        $region25: #{tpu_custom_call.1} parent=11 // pred_check
          %p216 = pneg %p155
        $region26: #{tpu_custom_call.1} parent=11 // pred_check_branch
          %218 = sbr.rel (%p216) target = $region28
        $region27: #{tpu_custom_call.1} parent=11 // pred_region
          _
        $region28: #{tpu_custom_call.1} parent=11 // pred_fallthru
          _
      $region12: #{tpu_custom_call.1} parent=5 // pred_fallthru
        _
      %p219 = scmp.lt.s32.totalorder %s19, 2
      // Predicated region
      $region29: #{tpu_custom_call.1} parent=5 // pred_check
        %p220 = pneg %p219
      $region30: #{tpu_custom_call.1} parent=5 // pred_check_branch
        %222 = sbr.rel (%p220) target = $region32
      $region31: #{tpu_custom_call.1} parent=5 // pred_region
        // Predicated region
        $region33: #{tpu_custom_call.1} parent=31 // pred_check
          %p223 = pneg %p39
        $region34: #{tpu_custom_call.1} parent=31 // pred_check_branch
          %225 = sbr.rel (%p223) target = $region36
        $region35: #{tpu_custom_call.1} parent=31 // pred_region
          %s226 = sand.u32 %s19, 1
          %s227 = scalar_lea.sflag [#allocation3], %s226
          %s228 = sand.u32 %s29, 1
          %s229 = smul.addr %s228, 8
          %s230 = scalar_lea.vmem [#allocation2], %s229
          %232 = vsyncadd %s227, 0
          %s233 = smul.addr %s19, 8
          %s234 = scalar_lea.hbm %s0, %s233
          %s236 = sshll.u32 %s234, 4
          %s237 = int_to_ptr.hbm [resolvable:$true] %s236
          %s238 = sshll.u32 %s230, 4
          %s239 = int_to_ptr.vmem [resolvable:$true] %s238
          %241 = dma.hbm_to_vmem [thread:$0]  %s237, 128, %s239, %s227
        $region36: #{tpu_custom_call.1} parent=31 // pred_fallthru
          _
        // Predicated region
        $region37: #{tpu_custom_call.1} parent=31 // pred_check
          %p242 = pneg %p107
        $region38: #{tpu_custom_call.1} parent=31 // pred_check_branch
          %244 = sbr.rel (%p242) target = $region40
        $region39: #{tpu_custom_call.1} parent=31 // pred_region
          %s245 = sand.u32 %s19, 1
          %s246 = scalar_lea.sflag [#allocation3], %s245
          %s247 = sand.u32 %s97, 1
          %s248 = smul.addr %s247, 8
          %s249 = scalar_lea.vmem [#allocation7], %s248
          %251 = vsyncadd %s246, 0
          %s252 = smul.addr %s19, 8
          %s253 = scalar_lea.hbm %s3, %s252
          %s255 = sshll.u32 %s253, 4
          %s256 = int_to_ptr.hbm [resolvable:$true] %s255
          %s257 = sshll.u32 %s249, 4
          %s258 = int_to_ptr.vmem [resolvable:$true] %s257
          %260 = dma.hbm_to_vmem [thread:$0]  %s256, 128, %s258, %s246
        $region40: #{tpu_custom_call.1} parent=31 // pred_fallthru
          _
      $region32: #{tpu_custom_call.1} parent=5 // pred_fallthru
        _
      %p261 = scmp.le.s32.totalorder 1, %s19
      %p262 = scmp.lt.s32.totalorder %s19, 3
      %p263 = pnand %p261, %p262
      %p264 = pneg %p263
      // Predicated region
      $region41: #{tpu_custom_call.1} parent=5 // pred_check
        _
      $region42: #{tpu_custom_call.1} parent=5 // pred_check_branch
        %266 = sbr.rel (%p263) target = $region44
      $region43: #{tpu_custom_call.1} parent=5 // pred_region
        %s267 = ssub.s32 %s19, 1
        %s268 = sand.u32 %s24, 1
        %s269 = scalar_lea.sflag [#allocation3], %s268
        %s270 = sand.u32 %s32, 1
        %s271 = smul.addr %s270, 8
        %s272 = scalar_lea.vmem [#allocation2], %s271
        // Predicated region
        $region45: #{tpu_custom_call.1} parent=43 // pred_check
          %p273 = pneg %p45
        $region46: #{tpu_custom_call.1} parent=43 // pred_check_branch
          %275 = sbr.rel (%p273) target = $region48
        $region47: #{tpu_custom_call.1} parent=43 // pred_region
          %277 = dma.done %s269, 128
        $region48: #{tpu_custom_call.1} parent=43 // pred_fallthru
          _
        // Predicated region
        $region49: #{tpu_custom_call.1} parent=43 // pred_check
          %p278 = pneg %p66
        $region50: #{tpu_custom_call.1} parent=43 // pred_check_branch
          %280 = sbr.rel (%p278) target = $region52
        $region51: #{tpu_custom_call.1} parent=43 // pred_region
          %282 = dma.done [#allocation6], 512
        $region52: #{tpu_custom_call.1} parent=43 // pred_fallthru
          _
        %s283 = sand.u32 %s24, 1
        %s284 = scalar_lea.sflag [#allocation3], %s283
        %s285 = sand.u32 %s100, 1
        %s286 = smul.addr %s285, 8
        %s287 = scalar_lea.vmem [#allocation7], %s286
        // Predicated region
        $region53: #{tpu_custom_call.1} parent=43 // pred_check
          %p288 = pneg %p113
        $region54: #{tpu_custom_call.1} parent=43 // pred_check_branch
          %290 = sbr.rel (%p288) target = $region56
        $region55: #{tpu_custom_call.1} parent=43 // pred_region
          %292 = dma.done %s284, 128
        $region56: #{tpu_custom_call.1} parent=43 // pred_fallthru
          _
        %s293 = sand.u32 %s24, 1
        %s294 = scalar_lea.sflag [#allocation3], %s293
        %s295 = sand.u32 %s32, 1
        %s296 = smul.addr %s295, 8
        %s297 = scalar_lea.vmem [#allocation2], %s296
        %p298 = pneg %p45
        %p299 = pneg %p42
        %p300 = pneg %p66
        %p301 = pneg %p63
        %p302 = pneg %p87
        %p303 = pneg %p84
        %s304 = sand.u32 %s24, 1
        %s305 = scalar_lea.sflag [#allocation3], %s304
        %s306 = sand.u32 %s100, 1
        %s307 = smul.addr %s306, 8
        %s308 = scalar_lea.vmem [#allocation7], %s307
        %p309 = pneg %p113
        %p310 = pneg %p110
        %p311 = pneg %p134
        %p312 = pneg %p131
        %p313 = pneg %p155
        %p314 = pneg %p152
        %p315 = pneg %p181
        %p316 = pneg %p178
        %s317 = sand.u32 %s168, 1
        %s318 = scalar_lea.sflag [#allocation4], %s317
        %s319 = sand.u32 %s168, 1
        %s320 = smul.addr %s319, 8
        %s321 = scalar_lea.vmem [#allocation8], %s320
        %v322 = vld [vmem:[%s272] sm:$0xff]
        %v323 = vld [vmem:[#allocation5] sm:$0xff]
        %v324 = vld [vmem:[#allocation5 + $0x8] sm:$0xff]
        %v325 = vld [vmem:[#allocation5 + $0x10] sm:$0xff]
        %v326 = vld [vmem:[#allocation5 + $0x18] sm:$0xff]
        %v327 = vld [vmem:[%s2] sm:$0x1]
        %v329 = vperm.slane %v327, 0
        %vm331 = vcmask 261120
        %v333 = vsel %vm331, %v322, 0
        %335 = vmatpush.msra.mxu0 0.0
        %336 = vmatpush.msra.mxu0 0.0
        %337 = vmatpush.msra.mxu0 0.0
        %338 = vmatpush.msra.mxu0 0.0
        %339 = vmatpush.msra.mxu0 0.0
        %340 = vmatpush.msra.mxu0 0.0
        %341 = vmatpush.msra.mxu0 0.0
        %342 = vmatpush.msra.mxu0 0.0
        %343 = vmatpush.msra.mxu0 0.0
        %344 = vmatpush.msra.mxu0 0.0
        %345 = vmatpush.msra.mxu0 0.0
        %346 = vmatpush.msra.mxu0 0.0
        %347 = vmatpush.msra.mxu0 %v326
        %348 = vmatpush.msra.mxu0 %v325
        %349 = vmatpush.msra.mxu0 %v324
        %350 = vmatpush.msra.mxu0 %v323
        %351 = vmatmul.f32.gmra.mxu0 %v333
        %v352 = vpop.f32.mrf.mxu0
        %v353 = vadd.f32 %v329, %v352
        %354 = vdwg.mxu0
        %v355 = vmul.f32 %v353, %v353
        %v356 = vld [vmem:[%s287] sm:$0xff]
        %v357 = vadd.f32 %v355, %v356
        %v358 = vsel %vm331, %v357, 0.0
        %359 = vadd.xlane.f32.xlu0 %v358
        %v360 = vpop.xlane.xlu0 %359
        %v361 = vmul.f32 %v360, 0.03125
        %v362 = vsub.f32 %v357, %v361
        %v363 = vmul.f32 %v362, %v362
        %v364 = vsel %vm331, %v363, 0.0
        %365 = vadd.xlane.f32.xlu0 %v364
        %v366 = vpop.xlane.xlu0 %365
        %v367 = vmul.f32 %v366, 0.03125
        %v368 = vadd.f32 %v367, 1e-05
        %v369 = vrsqrt.pop %v368
        %v370 = vmul.f32 %v369, %v368
        %v371 = vmul.f32 %v370, %v369
        %v372 = vmul.f32 0.5, %v371
        %v373 = vsub.f32 1.5, %v372
        %v374 = vmul.f32 %v369, %v373
        %vm375 = vweird.f32 %v368
        %vm376 = vweird.f32 %v369
        %vm377 = vmor %vm375, %vm376
        %v378 = vsel %vm377, %v369, %v374
        %v379 = vmul.f32 %v362, %v378
        %v380 = vld [vmem:[%s4] sm:$0x1]
        %v382 = vperm.slane %v380, 0
        %v384 = vmul.f32 %v379, %v382
        %v385 = vld [vmem:[%s5] sm:$0x1]
        %v387 = vperm.slane %v385, 0
        %v389 = vadd.f32 %v384, %v387
        %390 = vst.msk [vmem:[%s321] sm:$0xff] %vm331, %v389
        %s391 = sand.u32 %s168, 1
        %s392 = scalar_lea.sflag [#allocation4], %s391
        %s393 = sand.u32 %s168, 1
        %s394 = smul.addr %s393, 8
        %s395 = scalar_lea.vmem [#allocation8], %s394
        // Predicated region
        $region57: #{tpu_custom_call.1} parent=43 // pred_check
          %p396 = pneg %p178
        $region58: #{tpu_custom_call.1} parent=43 // pred_check_branch
          %398 = sbr.rel (%p396) target = $region60
        $region59: #{tpu_custom_call.1} parent=43 // pred_region
          %400 = vsyncadd %s392, 0
          %s401 = smul.addr %s24, 8
          %s402 = scalar_lea.hbm %s6, %s401
          %s404 = sshll.u32 %s395, 4
          %s405 = int_to_ptr.vmem [resolvable:$true] %s404
          %s406 = sshll.u32 %s402, 4
          %s407 = int_to_ptr.hbm [resolvable:$true] %s406
          %409 = dma.vmem_to_hbm [thread:$0]  %s405, 128, %s407, %s392
        $region60: #{tpu_custom_call.1} parent=43 // pred_fallthru
          _
      $region44: #{tpu_custom_call.1} parent=5 // pred_fallthru
        _
      %p410 = scmp.le.s32.totalorder 2, %s19
      // Predicated region
      $region61: #{tpu_custom_call.1} parent=5 // pred_check
        %p411 = pneg %p410
      $region62: #{tpu_custom_call.1} parent=5 // pred_check_branch
        %413 = sbr.rel (%p411) target = $region64
      $region63: #{tpu_custom_call.1} parent=5 // pred_region
        %s414 = ssub.s32 %s19, 2
        // Predicated region
        $region65: #{tpu_custom_call.1} parent=63 // pred_check
          %p415 = pneg %p184
        $region66: #{tpu_custom_call.1} parent=63 // pred_check_branch
          %417 = sbr.rel (%p415) target = $region68
        $region67: #{tpu_custom_call.1} parent=63 // pred_region
          %s418 = sand.u32 %s169, 1
          %s419 = scalar_lea.sflag [#allocation4], %s418
          %s420 = sand.u32 %s169, 1
          %s421 = smul.addr %s420, 8
          %s422 = scalar_lea.vmem [#allocation8], %s421
          %424 = dma.done %s419, 128
        $region68: #{tpu_custom_call.1} parent=63 // pred_fallthru
          _
      $region64: #{tpu_custom_call.1} parent=5 // pred_fallthru
        _
    $region6: #{tpu_custom_call.1} parent=1 // loop_footer
      %s23 = sadd.s32 1, %s19
    $region7: #{tpu_custom_call.1} parent=1 // loop_footer_branch
      %18 = sbr.rel target = $region3
    $region8: #{tpu_custom_call.1} parent=1 // loop_exit
      _
    %425 = vsyncpa [#allocation3], 1
    %s426 = scalar_lea.sflag [#allocation3], 1
    %427 = vsyncpa %s426, 1
    %428 = vsyncpa [#allocation6], 1
    %429 = vsyncpa [#allocation4], 1
    %s430 = scalar_lea.sflag [#allocation4], 1
    %431 = vsyncpa %s430, 1

</llo_original>
